<compile_context>
chip_gen: v7x
topology: tpu7x:2x2x1
jax: 0.10.0
libtpu: 0.0.40
codegen_flags: <defaults>
</compile_context>

<pallas_src>
import numpy as np
import jax
import jax.numpy as jnp
from jax.experimental import pallas as pl
from jax.experimental.pallas import tpu as pltpu

# ----------------------------- model sizes ----------------------------------
VOCAB      = 64    # number of tracks (rows of track_embeddings) == output_dim
EMB_DIM    = 32
HID_DIM    = 32
N_LAYERS   = 2     # kernel below is written for exactly 2 layers
OUTPUT_DIM = VOCAB
BATCH      = 8
DROPOUT_P  = 0.25  # eval-mode dropout == identity

# Per-pallas_call chunk of time steps: xg [T,8,128] f32 + h1 [T,8,32] f32
# ≈ 5 MiB at T=1024 — comfortably inside default scoped VMEM on v5e/v6e/v7x.
_CHUNK_T = 1024


# ----------------------------- Pallas kernel --------------------------------
def lstm2_kernel(xg_ref, state_in_ref, whh0_ref, wih1_ref, whh1_ref, b1_ref,
                 h1_out_ref, state_out_ref):
    """Whole T-step 2-layer LSTM recurrence in one kernel invocation.

    xg_ref        : [T, B, 4H] f32  precomputed layer-0 input gates (E0b[ids])
                                    == emb[ids] @ w_ih0 + b0 (bias folded in)
    state_in_ref  : [B, 4H]    f32  packed initial state  h0|h1|c0|c1
    whh0_ref      : [H, 4H]         layer-0 recurrent weights
    wih1_ref      : [H, 4H]         layer-1 input weights
    whh1_ref      : [H, 4H]         layer-1 recurrent weights
    b1_ref        : [1, 4H]         layer-1 combined bias (b_ih + b_hh)
    h1_out_ref    : [T, B, H]       per-step top-layer hidden state (fc input)
    state_out_ref : [B, 4H]         final packed state
    Gate ordering follows PyTorch nn.LSTM: (i, f, g, o) fused as 4*H columns.
    """
    T = xg_ref.shape[0]
    B, G = state_in_ref.shape
    H = G // 4

    s = state_in_ref[...]
    h0, h1 = s[:, 0:H], s[:, H:2 * H]
    c0, c1 = s[:, 2 * H:3 * H], s[:, 3 * H:4 * H]

    # Resident weights / biases loaded once (tiny: ~13 vregs total, no spill).
    whh0 = whh0_ref[...]
    wih1 = wih1_ref[...]
    whh1 = whh1_ref[...]
    b1 = jnp.broadcast_to(b1_ref[...], (B, G))      # hoisted: not re-broadcast per step

    # Lane-constant activation coefficients, hoisted out of the loop:
    #   sigmoid(x) = 0.5*tanh(0.5*x) + 0.5 on i/f/o lanes, tanh(x) on g lanes
    # so a single full-vreg tanh covers all four gates.
    lane = jax.lax.broadcasted_iota(jnp.int32, (B, G), 1)
    is_g = (lane >= 2 * H) & (lane < 3 * H)
    a_ln = jnp.where(is_g, 1.0, 0.5).astype(jnp.float32)   # pre-scale == post-scale
    b_ln = jnp.where(is_g, 0.0, 0.5).astype(jnp.float32)

    def act(g):
        t = jnp.tanh(g * a_ln)          # ONE EUP pass over the [B, 4H] gate slab
        return t * a_ln + b_ln

    def step(t, carry):
        h0, c0, h1, c1 = carry
        # Layer-1 recurrent half first: depends only on the carried h1, so it
        # overlaps layer 0's EUP/VALU chain on the MXU.
        g1_hh = jnp.dot(h1, whh1, preferred_element_type=jnp.float32) + b1
        # Layer 0: input gates (+ bias) were precomputed into xg.
        g0 = xg_ref[t] + jnp.dot(h0, whh0, preferred_element_type=jnp.float32)
        a0 = act(g0)
        c0n = a0[:, H:2 * H] * c0 + a0[:, 0:H] * a0[:, 2 * H:3 * H]   # f*c + i*g
        h0n = a0[:, 3 * H:4 * H] * jnp.tanh(c0n)                      # o*tanh(c)
        # Layer 1 (inter-layer dropout is identity in eval mode).
        g1 = g1_hh + jnp.dot(h0n, wih1, preferred_element_type=jnp.float32)
        a1 = act(g1)
        c1n = a1[:, H:2 * H] * c1 + a1[:, 0:H] * a1[:, 2 * H:3 * H]
        h1n = a1[:, 3 * H:4 * H] * jnp.tanh(c1n)
        h1_out_ref[t] = h1n                       # VMEM store; HBM writeback once at end
        return (h0n, c0n, h1n, c1n)

    h0, c0, h1, c1 = jax.lax.fori_loop(0, T, step, (h0, c0, h1, c1))
    state_out_ref[...] = jnp.concatenate([h0, h1, c0, c1], axis=1)


# ----------------------------- pallas_call wrapper ---------------------------
def _lstm_call(xg, state, kp):
    """xg [T, B, 4H] f32, state [B, 4H] f32 -> (h1_all [T, B, H], state_out)."""
    T, B, G = xg.shape
    H = G // 4

    def vmem():
        return pl.BlockSpec(memory_space=pltpu.MemorySpace.VMEM)

    flops = T * 3 * 2 * B * H * G                     # 3 small MXU pushes / step
    trans = T * 2 * B * (G + H)                       # 1 full + 1 narrow tanh / cell
    bytes_accessed = 4 * (xg.size + 2 * state.size + kp["w_hh0"].size
                          + kp["w_ih1"].size + kp["w_hh1"].size + kp["b1"].size
                          + T * B * H)

    h1_all, state_out = pl.pallas_call(
        lstm2_kernel,
        out_shape=(jax.ShapeDtypeStruct((T, B, H), jnp.float32),
                   jax.ShapeDtypeStruct((B, G), jnp.float32)),
        in_specs=[vmem(),                 # xg        (VMEM-resident, whole array)
                  vmem(),                 # packed initial state
                  vmem(), vmem(), vmem(), # w_hh0, w_ih1, w_hh1
                  vmem()],                # b1
        out_specs=(vmem(), vmem()),
        cost_estimate=pl.CostEstimate(flops=flops, transcendentals=trans,
                                      bytes_accessed=bytes_accessed),
    )(xg, state, kp["w_hh0"], kp["w_ih1"], kp["w_hh1"], kp["b1"])
    return h1_all, state_out


def _lstm_chunked(xg, state, kp):
    """Chunk very long decodes so xg + h1 stay within scoped VMEM (incl. v7x)."""
    T = xg.shape[0]
    if T <= _CHUNK_T:
        return _lstm_call(xg, state, kp)
    h1_parts = []
    for s in range(0, T, _CHUNK_T):
        h1_c, state = _lstm_call(xg[s:s + _CHUNK_T], state, kp)
        h1_parts.append(h1_c)
    return jnp.concatenate(h1_parts, axis=0), state


def _decode_steps(ids_tb, state, kp):
    """ids_tb [T, B] int32, state [B, 4H] f32 -> (preds [T, B, O], state_out)."""
    T, B = ids_tb.shape
    # Embedding folded through layer-0 input weights (+ bias): one XLA gather
    # for all T steps at once, entirely off the sequential critical path.
    # (Eval-mode dropout after the embedding is the identity.)
    xg = kp["e0b"][ids_tb]                                   # [T, B, 4H]
    h1_all, state_out = _lstm_chunked(xg, state, kp)
    # fc_out hoisted out of the recurrence: one batched [T*B, H] @ [H, O] matmul.
    preds = (h1_all.reshape(T * B, HID_DIM) @ kp["w_fc"] + kp["b_fc"])
    return preds.reshape(T, B, OUTPUT_DIM), state_out


def pack_state(hidden, cell):
    # [L,B,H], [L,B,H] -> [B, 4H] packed as h0|h1|c0|c1 (L == 2)
    return jnp.concatenate([hidden[0], hidden[1], cell[0], cell[1]], axis=1)


def unpack_state(state):
    H = HID_DIM
    hidden = jnp.stack([state[:, 0:H], state[:, H:2 * H]], axis=0)
    cell = jnp.stack([state[:, 2 * H:3 * H], state[:, 3 * H:4 * H]], axis=0)
    return hidden, cell


@jax.jit
def decoder_forward(input_ids, hidden, cell, kparams):
    """Module-equivalent single step: ids [B], hidden/cell [L,B,H]."""
    ids = input_ids.astype(jnp.int32).reshape(1, -1)
    preds, state_out = _decode_steps(ids, pack_state(hidden, cell), kparams)
    h_new, c_new = unpack_state(state_out)
    return preds[0], h_new, c_new


@jax.jit
def decoder_decode(ids_seq, hidden, cell, kparams):
    """Fused T-step decode (in-kernel loop): ids_seq [T, B] teacher-forced."""
    preds, state_out = _decode_steps(ids_seq.astype(jnp.int32),
                                     pack_state(hidden, cell), kparams)
    h_new, c_new = unpack_state(state_out)
    return preds, h_new, c_new


# ----------------------------- param prep ------------------------------------
def prepare_kernel_params(params):
    """One-time fusion of weights for the kernel layout (embedding fold etc.)."""
    emb = params["embeddings"].astype(jnp.float32)
    # E0b[v] = emb[v] @ w_ih0 + b0  -> layer-0 input gate table, [V, 4H]
    e0b = jnp.dot(emb, params["w_ih0"],
                  precision=jax.lax.Precision.HIGHEST) + params["b0"]
    return {
        "e0b":   e0b.astype(jnp.float32),
        "w_hh0": params["w_hh0"].astype(jnp.float32),
        "w_ih1": params["w_ih1"].astype(jnp.float32),
        "w_hh1": params["w_hh1"].astype(jnp.float32),
        "b1":    params["b1"].astype(jnp.float32),
        "w_fc":  params["w_fc"].astype(jnp.float32),
        "b_fc":  params["b_fc"].astype(jnp.float32),
    }


# ----------------------------- reference (pure JAX) ---------------------------
def decoder_forward_ref(input_ids, hidden, cell, params):
    x = params["embeddings"][input_ids].astype(jnp.float32)
    H = hidden.shape[-1]

    def cell_step(x, h, c, wih, whh, b):
        g = x @ wih + h @ whh + b
        i = jax.nn.sigmoid(g[:, 0 * H:1 * H])
        f = jax.nn.sigmoid(g[:, 1 * H:2 * H])
        gg = jnp.tanh(g[:, 2 * H:3 * H])
        o = jax.nn.sigmoid(g[:, 3 * H:4 * H])
        c_new = f * c + i * gg
        return o * jnp.tanh(c_new), c_new

    h0, c0 = cell_step(x, hidden[0], cell[0],
                       params["w_ih0"], params["w_hh0"], params["b0"])
    h1, c1 = cell_step(h0, hidden[1], cell[1],
                       params["w_ih1"], params["w_hh1"], params["b1"])
    pred = h1 @ params["w_fc"] + params["b_fc"]
    return pred, jnp.stack([h0, h1]), jnp.stack([c0, c1])


# ----------------------------- param init ------------------------------------
def init_params(key):
    ks = jax.random.split(key, 12)

    # track_embeddings: normalize(..., axis=0) -> column-wise L2 normalization.
    # (PyTorch keeps it double and casts after dropout; kept f32 here.)
    emb = jax.random.normal(ks[0], (VOCAB, EMB_DIM), dtype=jnp.float32)
    emb = emb / jnp.linalg.norm(emb, axis=0, keepdims=True)

    def u(k, shape, fan):  # torch LSTM/Linear default: U(-1/sqrt(fan), 1/sqrt(fan))
        bound = 1.0 / np.sqrt(fan)
        return jax.random.uniform(k, shape, jnp.float32, -bound, bound)

    return {
        "embeddings": emb,
        "w_ih0": u(ks[1], (EMB_DIM, 4 * HID_DIM), HID_DIM),
        "w_hh0": u(ks[2], (HID_DIM, 4 * HID_DIM), HID_DIM),
        "b0":    u(ks[3], (1, 4 * HID_DIM), HID_DIM)
                 + u(ks[4], (1, 4 * HID_DIM), HID_DIM),   # b_ih + b_hh
        "w_ih1": u(ks[5], (HID_DIM, 4 * HID_DIM), HID_DIM),
        "w_hh1": u(ks[6], (HID_DIM, 4 * HID_DIM), HID_DIM),
        "b1":    u(ks[7], (1, 4 * HID_DIM), HID_DIM)
                 + u(ks[8], (1, 4 * HID_DIM), HID_DIM),
        "w_fc":  u(ks[9], (HID_DIM, OUTPUT_DIM), HID_DIM),
        "b_fc":  u(ks[10], (1, OUTPUT_DIM), HID_DIM),
    }


# ----------------------------- main -------------------------------------------
if __name__ == "__main__":
    key = jax.random.PRNGKey(0)
    k_par, k_ids, k_h, k_c, k_seq = jax.random.split(key, 5)

    params = init_params(k_par)
    kparams = prepare_kernel_params(params)

    input_ids = jax.random.randint(k_ids, (BATCH,), 0, VOCAB, dtype=jnp.int32)
    hidden = jax.random.normal(k_h, (N_LAYERS, BATCH, HID_DIM), dtype=jnp.float32)
    cell = jax.random.normal(k_c, (N_LAYERS, BATCH, HID_DIM), dtype=jnp.float32)

    # --- single step: exact module-forward semantics ---
    pred, h_new, c_new = decoder_forward(input_ids, hidden, cell, kparams)
    jax.block_until_ready((pred, h_new, c_new))

    pred_r, h_r, c_r = decoder_forward_ref(input_ids, hidden, cell, params)
    np.testing.assert_allclose(np.asarray(pred), np.asarray(pred_r), rtol=1e-4, atol=1e-5)
    np.testing.assert_allclose(np.asarray(h_new), np.asarray(h_r), rtol=1e-4, atol=1e-5)
    np.testing.assert_allclose(np.asarray(c_new), np.asarray(c_r), rtol=1e-4, atol=1e-5)

    # --- fused multi-step decode: T steps in one pallas_call (in-kernel loop) ---
    T = 6
    ids_seq = jax.random.randint(k_seq, (T, BATCH), 0, VOCAB, dtype=jnp.int32)
    preds_seq, h_seq, c_seq = decoder_decode(ids_seq, hidden, cell, kparams)
    jax.block_until_ready((preds_seq, h_seq, c_seq))

    # reference: run the single-step pure-JAX reference T times
    h_acc, c_acc = hidden, cell
    preds_ref = []
    for t in range(T):
        p_t, h_acc, c_acc = decoder_forward_ref(ids_seq[t], h_acc, c_acc, params)
        preds_ref.append(p_t)
    preds_ref = jnp.stack(preds_ref)
    # slightly looser tolerance: f32 accumulation-order drift compounds over T steps
    np.testing.assert_allclose(np.asarray(preds_seq), np.asarray(preds_ref),
                               rtol=1e-3, atol=1e-4)
    np.testing.assert_allclose(np.asarray(h_seq), np.asarray(h_acc), rtol=1e-3, atol=1e-4)
    np.testing.assert_allclose(np.asarray(c_seq), np.asarray(c_acc), rtol=1e-3, atol=1e-4)

    print("KERNEL_OK")
</pallas_src>

<mosaic_0001>
module attributes {stable_mosaic.version = 11 : i64} {
  func.func @lstm2_kernel(%arg0: memref<1x8x128xf32, #tpu.memory_space<vmem>>, %arg1: memref<8x128xf32, #tpu.memory_space<vmem>>, %arg2: memref<32x128xf32, #tpu.memory_space<vmem>>, %arg3: memref<32x128xf32, #tpu.memory_space<vmem>>, %arg4: memref<32x128xf32, #tpu.memory_space<vmem>>, %arg5: memref<1x128xf32, #tpu.memory_space<vmem>>, %arg6: memref<1x8x32xf32, #tpu.memory_space<vmem>>, %arg7: memref<8x128xf32, #tpu.memory_space<vmem>>) attributes {dimension_semantics = [], scalar_prefetch = 0 : i64, scratch_operands = 0 : i64, tpu.core_type = #tpu.core_type<tc>} {
    %c0 = arith.constant 0 : index
    %c0_0 = arith.constant 0 : index
    %0 = vector.load %arg1[%c0, %c0_0] : memref<8x128xf32, #tpu.memory_space<vmem>>, vector<8x128xf32>
    %1 = vector.extract_strided_slice %0 {offsets = [0, 0], sizes = [8, 32], strides = [1, 1]} : vector<8x128xf32> to vector<8x32xf32>
    %2 = vector.extract_strided_slice %0 {offsets = [0, 32], sizes = [8, 32], strides = [1, 1]} : vector<8x128xf32> to vector<8x32xf32>
    %3 = vector.extract_strided_slice %0 {offsets = [0, 64], sizes = [8, 32], strides = [1, 1]} : vector<8x128xf32> to vector<8x32xf32>
    %4 = vector.extract_strided_slice %0 {offsets = [0, 96], sizes = [8, 32], strides = [1, 1]} : vector<8x128xf32> to vector<8x32xf32>
    %c0_1 = arith.constant 0 : index
    %c0_2 = arith.constant 0 : index
    %5 = vector.load %arg2[%c0_1, %c0_2] : memref<32x128xf32, #tpu.memory_space<vmem>>, vector<32x128xf32>
    %c0_3 = arith.constant 0 : index
    %c0_4 = arith.constant 0 : index
    %6 = vector.load %arg3[%c0_3, %c0_4] : memref<32x128xf32, #tpu.memory_space<vmem>>, vector<32x128xf32>
    %c0_5 = arith.constant 0 : index
    %c0_6 = arith.constant 0 : index
    %7 = vector.load %arg4[%c0_5, %c0_6] : memref<32x128xf32, #tpu.memory_space<vmem>>, vector<32x128xf32>
    %c0_7 = arith.constant 0 : index
    %c0_8 = arith.constant 0 : index
    %8 = vector.load %arg5[%c0_7, %c0_8] : memref<1x128xf32, #tpu.memory_space<vmem>>, vector<1x128xf32>
    %9 = vector.shape_cast %8 : vector<1x128xf32> to vector<1x128xf32>
    %10 = vector.broadcast %9 : vector<1x128xf32> to vector<8x128xf32>
    %11 = tpu.iota {dimensions = array<i32: 1>} : vector<8x128xi32>
    %c64_i32 = arith.constant 64 : i32
    %12 = vector.broadcast %c64_i32 : i32 to vector<8x128xi32>
    %13 = arith.cmpi sge, %11, %12 : vector<8x128xi32>
    %c96_i32 = arith.constant 96 : i32
    %14 = vector.broadcast %c96_i32 : i32 to vector<8x128xi32>
    %15 = arith.cmpi slt, %11, %14 : vector<8x128xi32>
    %16 = arith.andi %13, %15 : vector<8x128xi1>
    %cst = arith.constant 1.000000e+00 : f32
    %cst_9 = arith.constant 5.000000e-01 : f32
    %17 = vector.broadcast %cst : f32 to vector<8x128xf32>
    %18 = vector.broadcast %cst_9 : f32 to vector<8x128xf32>
    %19 = arith.select %16, %17, %18 : vector<8x128xi1>, vector<8x128xf32>
    %cst_10 = arith.constant 0.000000e+00 : f32
    %cst_11 = arith.constant 5.000000e-01 : f32
    %20 = vector.broadcast %cst_10 : f32 to vector<8x128xf32>
    %21 = vector.broadcast %cst_11 : f32 to vector<8x128xf32>
    %22 = arith.select %16, %20, %21 : vector<8x128xi1>, vector<8x128xf32>
    %c0_i32 = arith.constant 0 : i32
    %cst_12 = arith.constant dense<0.000000e+00> : vector<8x128xf32>
    %23 = tpu.matmul %2, %7, %cst_12 {dimension_numbers = #tpu.dot_dimension_numbers<[1], [0], [0], [1], [0, 0, 1, 1], [], []>} : vector<8x32xf32>, vector<32x128xf32>, vector<8x128xf32> -> vector<8x128xf32>
    %24 = arith.addf %23, %10 : vector<8x128xf32>
    %25 = arith.index_cast %c0_i32 : i32 to index
    %c0_13 = arith.constant 0 : index
    %c0_14 = arith.constant 0 : index
    %26 = vector.load %arg0[%25, %c0_13, %c0_14] : memref<1x8x128xf32, #tpu.memory_space<vmem>>, vector<1x8x128xf32>
    %27 = vector.shape_cast %26 : vector<1x8x128xf32> to vector<8x128xf32>
    %cst_15 = arith.constant dense<0.000000e+00> : vector<8x128xf32>
    %28 = tpu.matmul %1, %5, %cst_15 {dimension_numbers = #tpu.dot_dimension_numbers<[1], [0], [0], [1], [0, 0, 1, 1], [], []>} : vector<8x32xf32>, vector<32x128xf32>, vector<8x128xf32> -> vector<8x128xf32>
    %29 = arith.addf %27, %28 : vector<8x128xf32>
    %30 = arith.mulf %29, %19 : vector<8x128xf32>
    %31 = math.tanh %30 : vector<8x128xf32>
    %32 = arith.mulf %31, %19 : vector<8x128xf32>
    %33 = arith.addf %32, %22 : vector<8x128xf32>
    %34 = vector.extract_strided_slice %33 {offsets = [0, 32], sizes = [8, 32], strides = [1, 1]} : vector<8x128xf32> to vector<8x32xf32>
    %35 = arith.mulf %34, %3 : vector<8x32xf32>
    %36 = vector.extract_strided_slice %33 {offsets = [0, 0], sizes = [8, 32], strides = [1, 1]} : vector<8x128xf32> to vector<8x32xf32>
    %37 = vector.extract_strided_slice %33 {offsets = [0, 64], sizes = [8, 32], strides = [1, 1]} : vector<8x128xf32> to vector<8x32xf32>
    %38 = arith.mulf %36, %37 : vector<8x32xf32>
    %39 = arith.addf %35, %38 : vector<8x32xf32>
    %40 = vector.extract_strided_slice %33 {offsets = [0, 96], sizes = [8, 32], strides = [1, 1]} : vector<8x128xf32> to vector<8x32xf32>
    %41 = math.tanh %39 : vector<8x32xf32>
    %42 = arith.mulf %40, %41 : vector<8x32xf32>
    %cst_16 = arith.constant dense<0.000000e+00> : vector<8x128xf32>
    %43 = tpu.matmul %42, %6, %cst_16 {dimension_numbers = #tpu.dot_dimension_numbers<[1], [0], [0], [1], [0, 0, 1, 1], [], []>} : vector<8x32xf32>, vector<32x128xf32>, vector<8x128xf32> -> vector<8x128xf32>
    %44 = arith.addf %24, %43 : vector<8x128xf32>
    %45 = arith.mulf %44, %19 : vector<8x128xf32>
    %46 = math.tanh %45 : vector<8x128xf32>
    %47 = arith.mulf %46, %19 : vector<8x128xf32>
    %48 = arith.addf %47, %22 : vector<8x128xf32>
    %49 = vector.extract_strided_slice %48 {offsets = [0, 32], sizes = [8, 32], strides = [1, 1]} : vector<8x128xf32> to vector<8x32xf32>
    %50 = arith.mulf %49, %4 : vector<8x32xf32>
    %51 = vector.extract_strided_slice %48 {offsets = [0, 0], sizes = [8, 32], strides = [1, 1]} : vector<8x128xf32> to vector<8x32xf32>
    %52 = vector.extract_strided_slice %48 {offsets = [0, 64], sizes = [8, 32], strides = [1, 1]} : vector<8x128xf32> to vector<8x32xf32>
    %53 = arith.mulf %51, %52 : vector<8x32xf32>
    %54 = arith.addf %50, %53 : vector<8x32xf32>
    %55 = vector.extract_strided_slice %48 {offsets = [0, 96], sizes = [8, 32], strides = [1, 1]} : vector<8x128xf32> to vector<8x32xf32>
    %56 = math.tanh %54 : vector<8x32xf32>
    %57 = arith.mulf %55, %56 : vector<8x32xf32>
    %58 = arith.index_cast %c0_i32 : i32 to index
    %c0_17 = arith.constant 0 : index
    %c0_18 = arith.constant 0 : index
    %59 = vector.load %arg6[%58, %c0_17, %c0_18] : memref<1x8x32xf32, #tpu.memory_space<vmem>>, vector<1x8x32xf32>
    %60 = vector.shape_cast %59 : vector<1x8x32xf32> to vector<8x32xf32>
    %61 = vector.shape_cast %57 : vector<8x32xf32> to vector<1x8x32xf32>
    tpu.vector_store %arg6[%58, %c0_17, %c0_18], %61 {strides = array<i32>} : memref<1x8x32xf32, #tpu.memory_space<vmem>>, vector<1x8x32xf32>,
    %c1_i32 = arith.constant 1 : i32
    %62 = tpu.concatenate %42, %57, %39, %54 in 1 : vector<8x32xf32>, vector<8x32xf32>, vector<8x32xf32>, vector<8x32xf32> -> vector<8x128xf32>
    %c0_19 = arith.constant 0 : index
    %c0_20 = arith.constant 0 : index
    %63 = vector.load %arg7[%c0_19, %c0_20] : memref<8x128xf32, #tpu.memory_space<vmem>>, vector<8x128xf32>
    tpu.vector_store %arg7[%c0_19, %c0_20], %62 {strides = array<i32>} : memref<8x128xf32, #tpu.memory_space<vmem>>, vector<8x128xf32>,
    return
  }
}

</mosaic_0001>

<llo_original>
// kernel: decoder_forward.1
$region0: #{decoder_forward.1}
  #allocation0 [shape = 'u32[]', space=smem, size = 0x4, offset = 0x4, fixed_abs, tag = 'smem constant byte address 0x4 - core index']
  #allocation1 [shape = 'u32[144,128]{1,0:T(1,128)}', space=vmem, size = 0x12000, scoped, tag = 'internal scratch']
  %s0 = inlined_call_operand.vmem [shape: f32[1,8,128], index: 0, kind: input, shape index: {}]
  %s1 = inlined_call_operand.vmem [shape: f32[8,128], index: 1, kind: input, shape index: {}]
  %s2 = inlined_call_operand.vmem [shape: f32[32,128], index: 2, kind: input, shape index: {}]
  %s3 = inlined_call_operand.vmem [shape: f32[32,128], index: 3, kind: input, shape index: {}]
  %s4 = inlined_call_operand.vmem [shape: f32[32,128], index: 4, kind: input, shape index: {}]
  %s5 = inlined_call_operand.vmem [shape: f32[1,128], index: 5, kind: input, shape index: {}]
  %s6 = inlined_call_operand.vmem [shape: f32[1,8,32], index: 6, kind: output, shape index: {0}]
  %s7 = inlined_call_operand.vmem [shape: f32[8,128], index: 7, kind: output, shape index: {1}]
  %8 = xla_tuple %s6, %s7
  %s9 = sld [smem:[#allocation0]]
  $region42: #{decoder_forward.1} parent=0
    _
  %s11 = ssub.s32 1, %s9
  %s12 = scalar_select 0, %s11, %s9
  // Predicated region
  $region2: #{decoder_forward.1} parent=0 // pred_check
    _
  $region3: #{decoder_forward.1} parent=0 // pred_check_branch
    %14 = sbr.rel (0) target = $region5
  $region4: #{decoder_forward.1} parent=0 // pred_region
    _
  $region5: #{decoder_forward.1} parent=0 // pred_fallthru
    _
  // Predicated region
  $region6: #{decoder_forward.1} parent=0 // pred_check
    _
  $region7: #{decoder_forward.1} parent=0 // pred_check_branch
    %16 = sbr.rel (0) target = $region9
  $region8: #{decoder_forward.1} parent=0 // pred_region
    _
  $region9: #{decoder_forward.1} parent=0 // pred_fallthru
    _
  // Predicated region
  $region10: #{decoder_forward.1} parent=0 // pred_check
    _
  $region11: #{decoder_forward.1} parent=0 // pred_check_branch
    %18 = sbr.rel (0) target = $region13
  $region12: #{decoder_forward.1} parent=0 // pred_region
    _
  $region13: #{decoder_forward.1} parent=0 // pred_fallthru
    _
  // Predicated region
  $region14: #{decoder_forward.1} parent=0 // pred_check
    _
  $region15: #{decoder_forward.1} parent=0 // pred_check_branch
    %20 = sbr.rel (0) target = $region17
  $region16: #{decoder_forward.1} parent=0 // pred_region
    _
  $region17: #{decoder_forward.1} parent=0 // pred_fallthru
    _
  // Predicated region
  $region18: #{decoder_forward.1} parent=0 // pred_check
    _
  $region19: #{decoder_forward.1} parent=0 // pred_check_branch
    %22 = sbr.rel (0) target = $region21
  $region20: #{decoder_forward.1} parent=0 // pred_region
    _
  $region21: #{decoder_forward.1} parent=0 // pred_fallthru
    _
  // Predicated region
  $region22: #{decoder_forward.1} parent=0 // pred_check
    _
  $region23: #{decoder_forward.1} parent=0 // pred_check_branch
    %24 = sbr.rel (0) target = $region25
  $region24: #{decoder_forward.1} parent=0 // pred_region
    _
  $region25: #{decoder_forward.1} parent=0 // pred_fallthru
    _
  %v25 = vld [vmem:[%s1] sm:$0xff]
  %v26 = vld [vmem:[%s2] sm:$0xff]
  %v27 = vld [vmem:[%s2 + $0x8] sm:$0xff]
  %v28 = vld [vmem:[%s2 + $0x10] sm:$0xff]
  %v29 = vld [vmem:[%s2 + $0x18] sm:$0xff]
  %v30 = vld [vmem:[%s3] sm:$0xff]
  %v31 = vld [vmem:[%s3 + $0x8] sm:$0xff]
  %v32 = vld [vmem:[%s3 + $0x10] sm:$0xff]
  %v33 = vld [vmem:[%s3 + $0x18] sm:$0xff]
  %v34 = vld [vmem:[%s4] sm:$0xff]
  %v35 = vld [vmem:[%s4 + $0x8] sm:$0xff]
  %v36 = vld [vmem:[%s4 + $0x10] sm:$0xff]
  %v37 = vld [vmem:[%s4 + $0x18] sm:$0xff]
  %v38 = vld [vmem:[%s5] sm:$0x1]
  %v40 = vlaneseq
  %v41 = vshrl.u32 %v40, 7
  %v42 = vsub.s32 0, %v41
  %v43 = vrot.slane %v38, %v42
  %v45 = vlaneseq
  %v46 = vand.u32 %v45, 127
  %vm47 = vcmp.ge.s32.totalorder %v46, 64
  %vm48 = vcmp.lt.s32.totalorder %v46, 96
  %vm49 = vmand %vm47, %vm48
  %v50 = vsel %vm49, 1.0, 0.5
  %v51 = vsel %vm49, 0.0, 0.5
  %53 = vrot.lane.b32.xlu0 %v25, 96
  %v54 = vpop.permute.xlu0 %53
  %vm55 = vcmask 261120
  %v56 = vsel %vm55, %v54, 0
  %58 = vmatprep.subr.mxu0 0.0
  %59 = vmatpush1.msra.mxu0 %v34
  %60 = vmatprep.subr.mxu0 0.0
  %61 = vmatpush1.msra.mxu0 %v35
  %62 = vmatprep.subr.mxu0 0.0
  %63 = vmatpush1.msra.mxu0 %v36
  %64 = vmatprep.subr.mxu0 0.0
  %65 = vmatpush1.msra.mxu0 %v37
  %66 = vmatprep.subr.mxu0 0.0
  %67 = vmatpush1.msra.mxu0 0.0
  %68 = vmatprep.subr.mxu0 0.0
  %69 = vmatpush1.msra.mxu0 0.0
  %70 = vmatprep.subr.mxu0 0.0
  %71 = vmatpush1.msra.mxu0 0.0
  %72 = vmatprep.subr.mxu0 0.0
  %73 = vmatpush1.msra.mxu0 0.0
  %74 = vmatprep.subr.mxu0 0.0
  %75 = vmatpush1.msra.mxu0 0.0
  %76 = vmatprep.subr.mxu0 0.0
  %77 = vmatpush1.msra.mxu0 0.0
  %78 = vmatprep.subr.mxu0 0.0
  %79 = vmatpush1.msra.mxu0 0.0
  %80 = vmatprep.subr.mxu0 0.0
  %81 = vmatpush1.msra.mxu0 0.0
  %82 = vmatprep.subr.mxu0 0.0
  %83 = vmatpush1.msra.mxu0 0.0
  %84 = vmatprep.subr.mxu0 0.0
  %85 = vmatpush1.msra.mxu0 0.0
  %86 = vmatprep.subr.mxu0 0.0
  %87 = vmatpush1.msra.mxu0 0.0
  %88 = vmatprep.subr.mxu0 0.0
  %89 = vmatpush1.msra.mxu0 0.0
  %90 = vmatprep.subr.mxu0 0.0
  %91 = vmatpush1.msra.mxu0 0.0
  %92 = vmatprep.subr.mxu0 0.0
  %93 = vmatpush1.msra.mxu0 0.0
  %94 = vmatprep.subr.mxu0 0.0
  %95 = vmatpush1.msra.mxu0 0.0
  %96 = vmatprep.subr.mxu0 0.0
  %97 = vmatpush1.msra.mxu0 0.0
  %98 = vmatprep.subr.mxu0 0.0
  %99 = vmatpush1.msra.mxu0 0.0
  %100 = vmatprep.subr.mxu0 0.0
  %101 = vmatpush1.msra.mxu0 0.0
  %102 = vmatprep.subr.mxu0 0.0
  %103 = vmatpush1.msra.mxu0 0.0
  %104 = vmatprep.subr.mxu0 0.0
  %105 = vmatpush1.msra.mxu0 0.0
  %106 = vmatprep.subr.mxu0 0.0
  %107 = vmatpush1.msra.mxu0 0.0
  %108 = vmatprep.subr.mxu0 0.0
  %109 = vmatpush1.msra.mxu0 0.0
  %110 = vmatprep.subr.mxu0 0.0
  %111 = vmatpush1.msra.mxu0 0.0
  %112 = vmatprep.subr.mxu0 0.0
  %113 = vmatpush1.msra.mxu0 0.0
  %114 = vmatprep.subr.mxu0 0.0
  %115 = vmatpush1.msra.mxu0 0.0
  %116 = vmatprep.subr.mxu0 0.0
  %117 = vmatpush1.msra.mxu0 0.0
  %118 = vmatprep.subr.mxu0 0.0
  %119 = vmatpush1.msra.mxu0 0.0
  %120 = vmatprep.subr.mxu0 0.0
  %121 = vmatpush1.msra.mxu0 0.0
  %122 = vmatprep.mubr.f32.mxu0 0.0
  %123 = vmatmul.mubr.f32.gmra.mrb[0].mxu0 %v56
  %v124 = vpop.f32.mrb[0].mxu0
  %v125 = vadd.f32 %v43, %v124
  %v126 = vpop.f32.mrb[0].mxu0
  %127 = vdwg.mxu0
  %v128 = vld [vmem:[%s0] sm:$0xff]
  %v129 = vsel %vm55, %v25, 0
  %131 = vmatprep.subr.mxu0 0.0
  %132 = vmatpush1.msra.mxu0 %v26
  %133 = vmatprep.subr.mxu0 0.0
  %134 = vmatpush1.msra.mxu0 %v27
  %135 = vmatprep.subr.mxu0 0.0
  %136 = vmatpush1.msra.mxu0 %v28
  %137 = vmatprep.subr.mxu0 0.0
  %138 = vmatpush1.msra.mxu0 %v29
  %139 = vmatprep.subr.mxu0 0.0
  %140 = vmatpush1.msra.mxu0 0.0
  %141 = vmatprep.subr.mxu0 0.0
  %142 = vmatpush1.msra.mxu0 0.0
  %143 = vmatprep.subr.mxu0 0.0
  %144 = vmatpush1.msra.mxu0 0.0
  %145 = vmatprep.subr.mxu0 0.0
  %146 = vmatpush1.msra.mxu0 0.0
  %147 = vmatprep.subr.mxu0 0.0
  %148 = vmatpush1.msra.mxu0 0.0
  %149 = vmatprep.subr.mxu0 0.0
  %150 = vmatpush1.msra.mxu0 0.0
  %151 = vmatprep.subr.mxu0 0.0
  %152 = vmatpush1.msra.mxu0 0.0
  %153 = vmatprep.subr.mxu0 0.0
  %154 = vmatpush1.msra.mxu0 0.0
  %155 = vmatprep.subr.mxu0 0.0
  %156 = vmatpush1.msra.mxu0 0.0
  %157 = vmatprep.subr.mxu0 0.0
  %158 = vmatpush1.msra.mxu0 0.0
  %159 = vmatprep.subr.mxu0 0.0
  %160 = vmatpush1.msra.mxu0 0.0
  %161 = vmatprep.subr.mxu0 0.0
  %162 = vmatpush1.msra.mxu0 0.0
  %163 = vmatprep.subr.mxu0 0.0
  %164 = vmatpush1.msra.mxu0 0.0
  %165 = vmatprep.subr.mxu0 0.0
  %166 = vmatpush1.msra.mxu0 0.0
  %167 = vmatprep.subr.mxu0 0.0
  %168 = vmatpush1.msra.mxu0 0.0
  %169 = vmatprep.subr.mxu0 0.0
  %170 = vmatpush1.msra.mxu0 0.0
  %171 = vmatprep.subr.mxu0 0.0
  %172 = vmatpush1.msra.mxu0 0.0
  %173 = vmatprep.subr.mxu0 0.0
  %174 = vmatpush1.msra.mxu0 0.0
  %175 = vmatprep.subr.mxu0 0.0
  %176 = vmatpush1.msra.mxu0 0.0
  %177 = vmatprep.subr.mxu0 0.0
  %178 = vmatpush1.msra.mxu0 0.0
  %179 = vmatprep.subr.mxu0 0.0
  %180 = vmatpush1.msra.mxu0 0.0
  %181 = vmatprep.subr.mxu0 0.0
  %182 = vmatpush1.msra.mxu0 0.0
  %183 = vmatprep.subr.mxu0 0.0
  %184 = vmatpush1.msra.mxu0 0.0
  %185 = vmatprep.subr.mxu0 0.0
  %186 = vmatpush1.msra.mxu0 0.0
  %187 = vmatprep.subr.mxu0 0.0
  %188 = vmatpush1.msra.mxu0 0.0
  %189 = vmatprep.subr.mxu0 0.0
  %190 = vmatpush1.msra.mxu0 0.0
  %191 = vmatprep.subr.mxu0 0.0
  %192 = vmatpush1.msra.mxu0 0.0
  %193 = vmatprep.subr.mxu0 0.0
  %194 = vmatpush1.msra.mxu0 0.0
  %195 = vmatprep.mubr.f32.mxu0 0.0
  %196 = vmatmul.mubr.f32.gmra.mrb[0].mxu0 %v129
  %v197 = vpop.f32.mrb[0].mxu0
  %v198 = vadd.f32 0.0, %v197
  %v199 = vpop.f32.mrb[0].mxu0
  %200 = vdwg.mxu0
  %v201 = vadd.f32 %v128, %v198
  %v202 = vmul.f32 %v201, %v50
  %v203 = vtanh.pop %v202
  %v204 = vmul.f32 %v203, %v50
  %v205 = vadd.f32 %v204, %v51
  %v207 = vmul.f32 %v205, %v54
  %209 = vrot.lane.b32.xlu0 %v205, 64
  %v210 = vpop.permute.xlu0 %209
  %v212 = vmul.f32 %v205, %v210
  %214 = vrot.lane.b32.xlu0 %v212, 32
  %v215 = vpop.permute.xlu0 %214
  %v217 = vadd.f32 %v207, %v215
  %v218 = vtanh.pop %v217
  %220 = vrot.lane.b32.xlu0 %v218, 64
  %v221 = vpop.permute.xlu0 %220
  %v223 = vmul.f32 %v205, %v221
  %225 = vrot.lane.b32.xlu0 %v223, 32
  %v226 = vpop.permute.xlu0 %225
  %v227 = vsel %vm55, %v226, 0
  %229 = vmatprep.subr.mxu0 0.0
  %230 = vmatpush1.msra.mxu0 %v30
  %231 = vmatprep.subr.mxu0 0.0
  %232 = vmatpush1.msra.mxu0 %v31
  %233 = vmatprep.subr.mxu0 0.0
  %234 = vmatpush1.msra.mxu0 %v32
  %235 = vmatprep.subr.mxu0 0.0
  %236 = vmatpush1.msra.mxu0 %v33
  %237 = vmatprep.subr.mxu0 0.0
  %238 = vmatpush1.msra.mxu0 0.0
  %239 = vmatprep.subr.mxu0 0.0
  %240 = vmatpush1.msra.mxu0 0.0
  %241 = vmatprep.subr.mxu0 0.0
  %242 = vmatpush1.msra.mxu0 0.0
  %243 = vmatprep.subr.mxu0 0.0
  %244 = vmatpush1.msra.mxu0 0.0
  %245 = vmatprep.subr.mxu0 0.0
  %246 = vmatpush1.msra.mxu0 0.0
  %247 = vmatprep.subr.mxu0 0.0
  %248 = vmatpush1.msra.mxu0 0.0
  %249 = vmatprep.subr.mxu0 0.0
  %250 = vmatpush1.msra.mxu0 0.0
  %251 = vmatprep.subr.mxu0 0.0
  %252 = vmatpush1.msra.mxu0 0.0
  %253 = vmatprep.subr.mxu0 0.0
  %254 = vmatpush1.msra.mxu0 0.0
  %255 = vmatprep.subr.mxu0 0.0
  %256 = vmatpush1.msra.mxu0 0.0
  %257 = vmatprep.subr.mxu0 0.0
  %258 = vmatpush1.msra.mxu0 0.0
  %259 = vmatprep.subr.mxu0 0.0
  %260 = vmatpush1.msra.mxu0 0.0
  %261 = vmatprep.subr.mxu0 0.0
  %262 = vmatpush1.msra.mxu0 0.0
  %263 = vmatprep.subr.mxu0 0.0
  %264 = vmatpush1.msra.mxu0 0.0
  %265 = vmatprep.subr.mxu0 0.0
  %266 = vmatpush1.msra.mxu0 0.0
  %267 = vmatprep.subr.mxu0 0.0
  %268 = vmatpush1.msra.mxu0 0.0
  %269 = vmatprep.subr.mxu0 0.0
  %270 = vmatpush1.msra.mxu0 0.0
  %271 = vmatprep.subr.mxu0 0.0
  %272 = vmatpush1.msra.mxu0 0.0
  %273 = vmatprep.subr.mxu0 0.0
  %274 = vmatpush1.msra.mxu0 0.0
  %275 = vmatprep.subr.mxu0 0.0
  %276 = vmatpush1.msra.mxu0 0.0
  %277 = vmatprep.subr.mxu0 0.0
  %278 = vmatpush1.msra.mxu0 0.0
  %279 = vmatprep.subr.mxu0 0.0
  %280 = vmatpush1.msra.mxu0 0.0
  %281 = vmatprep.subr.mxu0 0.0
  %282 = vmatpush1.msra.mxu0 0.0
  %283 = vmatprep.subr.mxu0 0.0
  %284 = vmatpush1.msra.mxu0 0.0
  %285 = vmatprep.subr.mxu0 0.0
  %286 = vmatpush1.msra.mxu0 0.0
  %287 = vmatprep.subr.mxu0 0.0
  %288 = vmatpush1.msra.mxu0 0.0
  %289 = vmatprep.subr.mxu0 0.0
  %290 = vmatpush1.msra.mxu0 0.0
  %291 = vmatprep.subr.mxu0 0.0
  %292 = vmatpush1.msra.mxu0 0.0
  %293 = vmatprep.mubr.f32.mxu0 0.0
  %294 = vmatmul.mubr.f32.gmra.mrb[0].mxu0 %v227
  %v295 = vpop.f32.mrb[0].mxu0
  %v296 = vadd.f32 0.0, %v295
  %v297 = vpop.f32.mrb[0].mxu0
  %298 = vdwg.mxu0
  %v299 = vadd.f32 %v125, %v296
  %v300 = vmul.f32 %v299, %v50
  %v301 = vtanh.pop %v300
  %v302 = vmul.f32 %v301, %v50
  %v303 = vadd.f32 %v302, %v51
  %304 = vrot.lane.b32.xlu0 %v25, 64
  %v305 = vpop.permute.xlu0 %304
  %v307 = vmul.f32 %v303, %v305
  %309 = vrot.lane.b32.xlu0 %v303, 64
  %v310 = vpop.permute.xlu0 %309
  %v312 = vmul.f32 %v303, %v310
  %314 = vrot.lane.b32.xlu0 %v312, 32
  %v315 = vpop.permute.xlu0 %314
  %v317 = vadd.f32 %v307, %v315
  %v318 = vtanh.pop %v317
  %320 = vrot.lane.b32.xlu0 %v318, 64
  %v321 = vpop.permute.xlu0 %320
  %v323 = vmul.f32 %v303, %v321
  %325 = vrot.lane.b32.xlu0 %v323, 32
  %v326 = vpop.permute.xlu0 %325
  %328 = vst.msk [vmem:[%s6] sm:$0xff] %vm55, %v326
  %330 = vrot.lane.b32.xlu0 %v323, 64
  %v331 = vpop.permute.xlu0 %330
  %334 = vrot.lane.b32.xlu0 %v217, 32
  %v335 = vpop.permute.xlu0 %334
  %338 = vrot.lane.b32.xlu0 %v317, 64
  %v339 = vpop.permute.xlu0 %338
  %v341 = vsel %vm55, %v226, %v331
  %vm342 = vcmask 523264
  %v343 = vsel %vm342, %v341, %v335
  %vm344 = vcmask 785408
  %v345 = vsel %vm344, %v343, %v339
  %346 = vst [vmem:[%s7] sm:$0xff] %v345
  // Predicated region
  $region26: #{decoder_forward.1} parent=0 // pred_check
    _
  $region27: #{decoder_forward.1} parent=0 // pred_check_branch
    %348 = sbr.rel (0) target = $region29
  $region28: #{decoder_forward.1} parent=0 // pred_region
    _
  $region29: #{decoder_forward.1} parent=0 // pred_fallthru
    _
  // Predicated region
  $region30: #{decoder_forward.1} parent=0 // pred_check
    _
  $region31: #{decoder_forward.1} parent=0 // pred_check_branch
    %350 = sbr.rel (0) target = $region33
  $region32: #{decoder_forward.1} parent=0 // pred_region
    _
  $region33: #{decoder_forward.1} parent=0 // pred_fallthru
    _
  // Predicated region
  $region34: #{decoder_forward.1} parent=0 // pred_check
    _
  $region35: #{decoder_forward.1} parent=0 // pred_check_branch
    %352 = sbr.rel (0) target = $region37
  $region36: #{decoder_forward.1} parent=0 // pred_region
    _
  $region37: #{decoder_forward.1} parent=0 // pred_fallthru
    _
  // Predicated region
  $region38: #{decoder_forward.1} parent=0 // pred_check
    _
  $region39: #{decoder_forward.1} parent=0 // pred_check_branch
    %354 = sbr.rel (0) target = $region41
  $region40: #{decoder_forward.1} parent=0 // pred_region
    _
  $region41: #{decoder_forward.1} parent=0 // pred_fallthru
    _

</llo_original>
